<compile_context>
chip_gen: v6e
topology: v6e:2x2x1
jax: 0.10.0
libtpu: 0.0.40
codegen_flags: <defaults>
</compile_context>

<pallas_src>
import functools

import jax
import jax.numpy as jnp
from jax.experimental import pallas as pl
from jax.experimental.pallas import tpu as pltpu

_LANE = 128
_SUBLANE = 8


def _round_up(v, m):
    return ((v + m - 1) // m) * m


def prepare_weight(x1):
    """Pad the layer weight to a lane-dense (K, 128k) f32 slab.

    Done ONCE at weight init (not per forward): the padded columns are zero, so
    the padded output columns are tanh(0) = 0 and are sliced away by the wrapper.
    """
    K, N = x1.shape
    n_pad = _round_up(N, _LANE)
    return jnp.pad(x1.astype(jnp.float32), ((0, 0), (0, n_pad - N)))


def _mlp_layer2_kernel(x_ref, w_ref, o_ref):
    # One MXU pass (f32 accumulation, HIGHEST precision for torch.matmul f32
    # parity) followed by an EUP tanh. Everything is a single VMEM-resident tile;
    # output last dim is 128-wide so stores are unmasked vst.
    y = jnp.dot(
        x_ref[...],
        w_ref[...],
        preferred_element_type=jnp.float32,
        precision=jax.lax.Precision.HIGHEST,
    )
    o_ref[...] = jnp.tanh(y)


def _mlp_layer2_padded_call(x, w_padded):
    """Gridless pallas_call on whole-array VMEM tiles; returns the (M, 128k) slab."""
    M, K = x.shape
    K2, Np = w_padded.shape
    assert K == K2, f"contraction mismatch: {K} vs {K2}"
    assert Np % _LANE == 0, "weight must be prepared with prepare_weight()"

    # Advisory cost for XLA's scheduler: count the padded/actual DMA traffic
    # (x rows land in (·,128)-lane tiles, weight sublane-padded to a multiple of 8),
    # not the logical 26 KB.
    m_pad = _round_up(M, _SUBLANE)
    k_pad = _round_up(K, _SUBLANE)
    cost = pl.CostEstimate(
        flops=2 * M * K * Np,
        transcendentals=M * Np,
        bytes_accessed=(m_pad * _LANE + k_pad * Np + m_pad * Np) * 4,
    )

    return pl.pallas_call(
        _mlp_layer2_kernel,
        out_shape=jax.ShapeDtypeStruct((M, Np), jnp.float32),
        # Gridless: whole arrays map straight into VMEM (no pipeline machinery,
        # no index maps). Block shape == full array satisfies the (8,128) rule via
        # the full-extent exception; the output (M,128) is natively aligned.
        in_specs=[
            pl.BlockSpec(memory_space=pltpu.MemorySpace.VMEM),
            pl.BlockSpec(memory_space=pltpu.MemorySpace.VMEM),
        ],
        out_specs=pl.BlockSpec(memory_space=pltpu.MemorySpace.VMEM),
        cost_estimate=cost,
    )(x, w_padded)


@functools.partial(jax.jit, static_argnames=("n_out",))
def mlp_layer2(x, w_padded, *, n_out):
    """Module-equivalent forward: tanh(x @ x1), with x1 pre-padded by prepare_weight.

    jit fuses the lane-dense kernel and the trailing slice into one dispatch.
    Works for any M (stack tokens to amortize the per-call fixed cost).
    """
    y_padded = _mlp_layer2_padded_call(x, w_padded)
    return y_padded[:, :n_out]


def mlp_layer2_ref(x, x1):
    return jnp.tanh(jnp.matmul(x, x1, precision=jax.lax.Precision.HIGHEST))


if __name__ == "__main__":
    key = jax.random.PRNGKey(0)
    k0, k1 = jax.random.split(key)
    # Shapes as annotated in the PyTorch module: x [32, 50], x1 [50, 50], float32.
    x = jax.random.normal(k0, (32, 50), dtype=jnp.float32)
    x1 = jax.random.normal(k1, (50, 50), dtype=jnp.float32)

    # Pad the weight ONCE at init (lane-dense layout), then run the forward.
    w_padded = prepare_weight(x1)
    out = mlp_layer2(x, w_padded, n_out=x1.shape[1])
    out = jax.block_until_ready(out)

    ref = mlp_layer2_ref(x, x1)
    assert out.shape == (32, 50)
    assert out.dtype == jnp.float32
    assert jnp.allclose(out, ref, atol=1e-5, rtol=1e-5)
    print("KERNEL_OK")
</pallas_src>

<mosaic_0001>
module attributes {stable_mosaic.version = 11 : i64} {
  func.func @_mlp_layer2_kernel(%arg0: memref<32x50xf32, #tpu.memory_space<vmem>>, %arg1: memref<50x128xf32, #tpu.memory_space<vmem>>, %arg2: memref<32x128xf32, #tpu.memory_space<vmem>>) attributes {dimension_semantics = [], scalar_prefetch = 0 : i64, scratch_operands = 0 : i64, tpu.core_type = #tpu.core_type<tc>} {
    %c0 = arith.constant 0 : index
    %c0_0 = arith.constant 0 : index
    %0 = vector.load %arg0[%c0, %c0_0] : memref<32x50xf32, #tpu.memory_space<vmem>>, vector<32x50xf32>
    %c0_1 = arith.constant 0 : index
    %c0_2 = arith.constant 0 : index
    %1 = vector.load %arg1[%c0_1, %c0_2] : memref<50x128xf32, #tpu.memory_space<vmem>>, vector<50x128xf32>
    %cst = arith.constant dense<0.000000e+00> : vector<32x128xf32>
    %2 = tpu.matmul %0, %1, %cst {dimension_numbers = #tpu.dot_dimension_numbers<[1], [0], [0], [1], [0, 0, 1, 1], [], []>, precision = #tpu.contract_precision<fp32>} : vector<32x50xf32>, vector<50x128xf32>, vector<32x128xf32> -> vector<32x128xf32>
    %3 = math.tanh %2 : vector<32x128xf32>
    %c0_3 = arith.constant 0 : index
    %c0_4 = arith.constant 0 : index
    %4 = vector.load %arg2[%c0_3, %c0_4] : memref<32x128xf32, #tpu.memory_space<vmem>>, vector<32x128xf32>
    tpu.vector_store %arg2[%c0_3, %c0_4], %3 {strides = array<i32>} : memref<32x128xf32, #tpu.memory_space<vmem>>, vector<32x128xf32>,
    return
  }
}

</mosaic_0001>

<llo_original>
// kernel: mlp_layer2.1
$region0: #{mlp_layer2.1}
  #allocation0 [shape = 'u32[]', space=smem, size = 0x4, offset = 0x4, fixed_abs, tag = 'smem constant byte address 0x4 - core index']
  #allocation1 [shape = 'u32[144,128]{1,0:T(1,128)}', space=vmem, size = 0x12000, scoped, tag = 'internal scratch']
  %s0 = inlined_call_operand.hbm [shape: f32[32,50], index: 0, kind: input, shape index: {}]
  %s1 = inlined_call_operand.hbm [shape: f32[50,128], index: 1, kind: input, shape index: {}]
  %s2 = inlined_call_operand.hbm [shape: f32[32,128], index: 2, kind: output, shape index: {}]
  %s3 = sld [smem:[#allocation0]]
  $region26: #{mlp_layer2.1} parent=0
    _
  %s5 = ssub.s32 1, %s3
  %s6 = scalar_select 0, %s5, %s3
  $region1: #{mlp_layer2.1} parent=0
    #allocation2 [shape = 'u8[16384]{0}', space=vmem, size = 0x4000, scoped, tag = 'input window, operand 0, single buffered']
    #allocation3 [shape = 's32[1]{0}', space=sflag, size = 0x4, scoped, tag = 'scoped memory for mlp_layer2.1']
    #allocation4 [shape = 's32[1]{0}', space=sflag, size = 0x4, scoped, tag = 'scoped memory for mlp_layer2.1']
    #allocation5 [shape = 'u8[28672]{0}', space=vmem, size = 0x7000, scoped, tag = 'input window, operand 1, single buffered']
    #allocation6 [shape = 's32[1]{0}', space=sflag, size = 0x4, scoped, tag = 'scoped memory for mlp_layer2.1']
    #allocation7 [shape = 'u8[16384]{0}', space=vmem, size = 0x4000, scoped, tag = 'output window, operand 0, single buffered']
    %7 = vsyncpa [#allocation3], 0
    %8 = vsyncpa [#allocation6], 0
    %9 = vsyncpa [#allocation4], 0
    // Predicated region
    $region2: #{mlp_layer2.1} parent=1 // pred_check
      _
    $region3: #{mlp_layer2.1} parent=1 // pred_check_branch
      %11 = sbr.rel (0) target = $region5
    $region4: #{mlp_layer2.1} parent=1 // pred_region
      %s13 = ssub.s32 512, 512
      %14 = vsyncadd [#allocation3], %s13
      %s15 = sshll.u32 [#allocation2], 4
      %s16 = int_to_ptr.vmem [resolvable:$true] %s15
      %21 = dma.hbm_to_vmem [thread:$0]  %s0, 512, %s16, [#allocation3], 128, 128, 8
    $region5: #{mlp_layer2.1} parent=1 // pred_fallthru
      _
    // Predicated region
    $region6: #{mlp_layer2.1} parent=1 // pred_check
      _
    $region7: #{mlp_layer2.1} parent=1 // pred_check_branch
      %23 = sbr.rel (0) target = $region9
    $region8: #{mlp_layer2.1} parent=1 // pred_region
      %s25 = ssub.s32 896, 896
      %26 = vsyncadd [#allocation6], %s25
      %s27 = sshll.u32 [#allocation5], 4
      %s28 = int_to_ptr.vmem [resolvable:$true] %s27
      %33 = dma.hbm_to_vmem [thread:$0]  %s1, 896, %s28, [#allocation6], 128, 128, 8
    $region9: #{mlp_layer2.1} parent=1 // pred_fallthru
      _
    // Predicated region
    $region10: #{mlp_layer2.1} parent=1 // pred_check
      _
    $region11: #{mlp_layer2.1} parent=1 // pred_check_branch
      %35 = sbr.rel (0) target = $region13
    $region12: #{mlp_layer2.1} parent=1 // pred_region
      %36 = dma.done [#allocation3], 512
    $region13: #{mlp_layer2.1} parent=1 // pred_fallthru
      _
    // Predicated region
    $region14: #{mlp_layer2.1} parent=1 // pred_check
      _
    $region15: #{mlp_layer2.1} parent=1 // pred_check_branch
      %38 = sbr.rel (0) target = $region17
    $region16: #{mlp_layer2.1} parent=1 // pred_region
      %39 = dma.done [#allocation6], 896
    $region17: #{mlp_layer2.1} parent=1 // pred_fallthru
      _
    %v40 = vld [vmem:[#allocation2] sm:$0xff]
    %v41 = vld [vmem:[#allocation2 + $0x8] sm:$0xff]
    %v42 = vld [vmem:[#allocation2 + $0x10] sm:$0xff]
    %v43 = vld [vmem:[#allocation2 + $0x18] sm:$0xff]
    %v44 = vld [vmem:[#allocation5] sm:$0xff]
    %v45 = vld [vmem:[#allocation5 + $0x8] sm:$0xff]
    %v46 = vld [vmem:[#allocation5 + $0x10] sm:$0xff]
    %v47 = vld [vmem:[#allocation5 + $0x18] sm:$0xff]
    %v48 = vld [vmem:[#allocation5 + $0x20] sm:$0xff]
    %v49 = vld [vmem:[#allocation5 + $0x28] sm:$0xff]
    %v50 = vld [vmem:[#allocation5 + $0x30] sm:$0x3]
    %vm51 = vcmask 408576
    %v53 = vsel %vm51, %v40, 0
    %v56 = vsel %vm51, %v41, 0
    %v59 = vsel %vm51, %v42, 0
    %v62 = vsel %vm51, %v43, 0
    %vm64 = vcmask 1041408
    %v66 = vsel %vm64, %v50, 0
    %68 = vmatprep.subr.mxu0 0.0
    %69 = vmatpush1.msra.mxu0 0.0
    %70 = vmatprep.subr.mxu0 0.0
    %71 = vmatpush1.msra.mxu0 0.0
    %72 = vmatprep.subr.mxu0 0.0
    %73 = vmatpush1.msra.mxu0 0.0
    %74 = vmatprep.subr.mxu0 0.0
    %75 = vmatpush1.msra.mxu0 0.0
    %76 = vmatprep.subr.mxu0 0.0
    %77 = vmatpush1.msra.mxu0 0.0
    %78 = vmatprep.subr.mxu0 0.0
    %79 = vmatpush1.msra.mxu0 0.0
    %80 = vmatprep.subr.mxu0 0.0
    %81 = vmatpush1.msra.mxu0 0.0
    %82 = vmatprep.subr.mxu0 0.0
    %83 = vmatpush1.msra.mxu0 0.0
    %84 = vmatprep.subr.mxu0 0.0
    %85 = vmatpush1.msra.mxu0 0.0
    %86 = vmatprep.subr.mxu0 0.0
    %v87 = vand.u32 %v66, 4294901760
    %88 = vmatpush1.msra.mxu0 %v87
    %89 = vmatprep.subr.mxu0 0.0
    %v90 = vand.u32 %v49, 4294901760
    %91 = vmatpush1.msra.mxu0 %v90
    %92 = vmatprep.subr.mxu0 0.0
    %v93 = vand.u32 %v48, 4294901760
    %94 = vmatpush1.msra.mxu0 %v93
    %95 = vmatprep.subr.mxu0 0.0
    %v96 = vand.u32 %v47, 4294901760
    %97 = vmatpush1.msra.mxu0 %v96
    %98 = vmatprep.subr.mxu0 0.0
    %v99 = vand.u32 %v46, 4294901760
    %100 = vmatpush1.msra.mxu0 %v99
    %101 = vmatprep.subr.mxu0 0.0
    %v102 = vand.u32 %v45, 4294901760
    %103 = vmatpush1.msra.mxu0 %v102
    %104 = vmatprep.subr.mxu0 0.0
    %v105 = vand.u32 %v44, 4294901760
    %106 = vmatpush1.msra.mxu0 %v105
    %107 = vmatprep.subr.mxu0 0.0
    %108 = vmatpush2.msra.mxu0 0.0
    %109 = vmatprep.subr.mxu0 0.0
    %110 = vmatpush2.msra.mxu0 0.0
    %111 = vmatprep.subr.mxu0 0.0
    %112 = vmatpush2.msra.mxu0 0.0
    %113 = vmatprep.subr.mxu0 0.0
    %114 = vmatpush2.msra.mxu0 0.0
    %115 = vmatprep.subr.mxu0 0.0
    %116 = vmatpush2.msra.mxu0 0.0
    %117 = vmatprep.subr.mxu0 0.0
    %118 = vmatpush2.msra.mxu0 0.0
    %119 = vmatprep.subr.mxu0 0.0
    %120 = vmatpush2.msra.mxu0 0.0
    %121 = vmatprep.subr.mxu0 0.0
    %122 = vmatpush2.msra.mxu0 0.0
    %123 = vmatprep.subr.mxu0 0.0
    %124 = vmatpush2.msra.mxu0 0.0
    %125 = vmatprep.subr.mxu0 0.0
    %126 = vmatpush2.msra.mxu0 0.0
    %127 = vmatprep.subr.mxu0 0.0
    %128 = vmatpush2.msra.mxu0 0.0
    %129 = vmatprep.subr.mxu0 0.0
    %130 = vmatpush2.msra.mxu0 0.0
    %131 = vmatprep.subr.mxu0 0.0
    %132 = vmatpush2.msra.mxu0 0.0
    %133 = vmatprep.subr.mxu0 0.0
    %134 = vmatpush2.msra.mxu0 0.0
    %135 = vmatprep.subr.mxu0 0.0
    %136 = vmatpush2.msra.mxu0 0.0
    %137 = vmatprep.subr.mxu0 0.0
    %138 = vmatpush2.msra.mxu0 0.0
    %139 = vmatprep.mubr.f32.mxu0 0.0
    %v140 = vand.u32 %v53, 4294901760
    %v141 = vsub.f32 %v53, %v140
    %v142 = vand.u32 %v141, 4294901760
    %v143 = vsub.f32 %v141, %v142
    %v144 = vand.u32 %v143, 4294901760
    %145 = vmatmul.mubr.f32.gmra.mxu0 %v144
    %v146 = vpop.f32.mrf.mxu0
    %v147 = vadd.f32 0.0, %v146
    %v148 = vpop.f32.mrf.mxu0
    %149 = vmatprep.mubr.f32.mxu0 0.0
    %v150 = vand.u32 %v56, 4294901760
    %v151 = vsub.f32 %v56, %v150
    %v152 = vand.u32 %v151, 4294901760
    %v153 = vsub.f32 %v151, %v152
    %v154 = vand.u32 %v153, 4294901760
    %155 = vmatmul.mubr.f32.gmra.mxu0 %v154
    %v156 = vpop.f32.mrf.mxu0
    %v157 = vadd.f32 0.0, %v156
    %v158 = vpop.f32.mrf.mxu0
    %159 = vmatprep.mubr.f32.mxu0 0.0
    %v160 = vand.u32 %v59, 4294901760
    %v161 = vsub.f32 %v59, %v160
    %v162 = vand.u32 %v161, 4294901760
    %v163 = vsub.f32 %v161, %v162
    %v164 = vand.u32 %v163, 4294901760
    %165 = vmatmul.mubr.f32.gmra.mxu0 %v164
    %v166 = vpop.f32.mrf.mxu0
    %v167 = vadd.f32 0.0, %v166
    %v168 = vpop.f32.mrf.mxu0
    %169 = vmatprep.mubr.f32.mxu0 0.0
    %v170 = vand.u32 %v62, 4294901760
    %v171 = vsub.f32 %v62, %v170
    %v172 = vand.u32 %v171, 4294901760
    %v173 = vsub.f32 %v171, %v172
    %v174 = vand.u32 %v173, 4294901760
    %175 = vmatmul.mubr.f32.gmra.mxu0 %v174
    %v176 = vpop.f32.mrf.mxu0
    %v177 = vadd.f32 0.0, %v176
    %v178 = vpop.f32.mrf.mxu0
    %179 = vdwg.mxu0
    %180 = vmatprep.subr.mxu0 0.0
    %181 = vmatpush1.msra.mxu0 0.0
    %182 = vmatprep.subr.mxu0 0.0
    %183 = vmatpush1.msra.mxu0 0.0
    %184 = vmatprep.subr.mxu0 0.0
    %185 = vmatpush1.msra.mxu0 0.0
    %186 = vmatprep.subr.mxu0 0.0
    %187 = vmatpush1.msra.mxu0 0.0
    %188 = vmatprep.subr.mxu0 0.0
    %189 = vmatpush1.msra.mxu0 0.0
    %190 = vmatprep.subr.mxu0 0.0
    %191 = vmatpush1.msra.mxu0 0.0
    %192 = vmatprep.subr.mxu0 0.0
    %193 = vmatpush1.msra.mxu0 0.0
    %194 = vmatprep.subr.mxu0 0.0
    %195 = vmatpush1.msra.mxu0 0.0
    %196 = vmatprep.subr.mxu0 0.0
    %197 = vmatpush1.msra.mxu0 0.0
    %198 = vmatprep.subr.mxu0 0.0
    %v199 = vand.u32 %v66, 4294901760
    %v200 = vsub.f32 %v66, %v199
    %v201 = vand.u32 %v200, 4294901760
    %v202 = vsub.f32 %v200, %v201
    %v203 = vand.u32 %v202, 4294901760
    %204 = vmatpush1.msra.mxu0 %v203
    %205 = vmatprep.subr.mxu0 0.0
    %v206 = vand.u32 %v49, 4294901760
    %v207 = vsub.f32 %v49, %v206
    %v208 = vand.u32 %v207, 4294901760
    %v209 = vsub.f32 %v207, %v208
    %v210 = vand.u32 %v209, 4294901760
    %211 = vmatpush1.msra.mxu0 %v210
    %212 = vmatprep.subr.mxu0 0.0
    %v213 = vand.u32 %v48, 4294901760
    %v214 = vsub.f32 %v48, %v213
    %v215 = vand.u32 %v214, 4294901760
    %v216 = vsub.f32 %v214, %v215
    %v217 = vand.u32 %v216, 4294901760
    %218 = vmatpush1.msra.mxu0 %v217
    %219 = vmatprep.subr.mxu0 0.0
    %v220 = vand.u32 %v47, 4294901760
    %v221 = vsub.f32 %v47, %v220
    %v222 = vand.u32 %v221, 4294901760
    %v223 = vsub.f32 %v221, %v222
    %v224 = vand.u32 %v223, 4294901760
    %225 = vmatpush1.msra.mxu0 %v224
    %226 = vmatprep.subr.mxu0 0.0
    %v227 = vand.u32 %v46, 4294901760
    %v228 = vsub.f32 %v46, %v227
    %v229 = vand.u32 %v228, 4294901760
    %v230 = vsub.f32 %v228, %v229
    %v231 = vand.u32 %v230, 4294901760
    %232 = vmatpush1.msra.mxu0 %v231
    %233 = vmatprep.subr.mxu0 0.0
    %v234 = vand.u32 %v45, 4294901760
    %v235 = vsub.f32 %v45, %v234
    %v236 = vand.u32 %v235, 4294901760
    %v237 = vsub.f32 %v235, %v236
    %v238 = vand.u32 %v237, 4294901760
    %239 = vmatpush1.msra.mxu0 %v238
    %240 = vmatprep.subr.mxu0 0.0
    %v241 = vand.u32 %v44, 4294901760
    %v242 = vsub.f32 %v44, %v241
    %v243 = vand.u32 %v242, 4294901760
    %v244 = vsub.f32 %v242, %v243
    %v245 = vand.u32 %v244, 4294901760
    %246 = vmatpush1.msra.mxu0 %v245
    %247 = vmatprep.subr.mxu0 0.0
    %248 = vmatpush2.msra.mxu0 0.0
    %249 = vmatprep.subr.mxu0 0.0
    %250 = vmatpush2.msra.mxu0 0.0
    %251 = vmatprep.subr.mxu0 0.0
    %252 = vmatpush2.msra.mxu0 0.0
    %253 = vmatprep.subr.mxu0 0.0
    %254 = vmatpush2.msra.mxu0 0.0
    %255 = vmatprep.subr.mxu0 0.0
    %256 = vmatpush2.msra.mxu0 0.0
    %257 = vmatprep.subr.mxu0 0.0
    %258 = vmatpush2.msra.mxu0 0.0
    %259 = vmatprep.subr.mxu0 0.0
    %260 = vmatpush2.msra.mxu0 0.0
    %261 = vmatprep.subr.mxu0 0.0
    %262 = vmatpush2.msra.mxu0 0.0
    %263 = vmatprep.subr.mxu0 0.0
    %264 = vmatpush2.msra.mxu0 0.0
    %265 = vmatprep.subr.mxu0 0.0
    %266 = vmatpush2.msra.mxu0 0.0
    %267 = vmatprep.subr.mxu0 0.0
    %268 = vmatpush2.msra.mxu0 0.0
    %269 = vmatprep.subr.mxu0 0.0
    %270 = vmatpush2.msra.mxu0 0.0
    %271 = vmatprep.subr.mxu0 0.0
    %272 = vmatpush2.msra.mxu0 0.0
    %273 = vmatprep.subr.mxu0 0.0
    %274 = vmatpush2.msra.mxu0 0.0
    %275 = vmatprep.subr.mxu0 0.0
    %276 = vmatpush2.msra.mxu0 0.0
    %277 = vmatprep.subr.mxu0 0.0
    %278 = vmatpush2.msra.mxu0 0.0
    %279 = vmatprep.mubr.f32.mxu0 0.0
    %v280 = vand.u32 %v53, 4294901760
    %281 = vmatmul.mubr.f32.gmra.mxu0 %v280
    %v282 = vpop.f32.mrf.mxu0
    %v283 = vadd.f32 %v147, %v282
    %v284 = vpop.f32.mrf.mxu0
    %285 = vmatprep.mubr.f32.mxu0 0.0
    %v286 = vand.u32 %v56, 4294901760
    %287 = vmatmul.mubr.f32.gmra.mxu0 %v286
    %v288 = vpop.f32.mrf.mxu0
    %v289 = vadd.f32 %v157, %v288
    %v290 = vpop.f32.mrf.mxu0
    %291 = vmatprep.mubr.f32.mxu0 0.0
    %v292 = vand.u32 %v59, 4294901760
    %293 = vmatmul.mubr.f32.gmra.mxu0 %v292
    %v294 = vpop.f32.mrf.mxu0
    %v295 = vadd.f32 %v167, %v294
    %v296 = vpop.f32.mrf.mxu0
    %297 = vmatprep.mubr.f32.mxu0 0.0
    %v298 = vand.u32 %v62, 4294901760
    %299 = vmatmul.mubr.f32.gmra.mxu0 %v298
    %v300 = vpop.f32.mrf.mxu0
    %v301 = vadd.f32 %v177, %v300
    %v302 = vpop.f32.mrf.mxu0
    %303 = vdwg.mxu0
    %304 = vmatprep.subr.mxu0 0.0
    %305 = vmatpush1.msra.mxu0 0.0
    %306 = vmatprep.subr.mxu0 0.0
    %307 = vmatpush1.msra.mxu0 0.0
    %308 = vmatprep.subr.mxu0 0.0
    %309 = vmatpush1.msra.mxu0 0.0
    %310 = vmatprep.subr.mxu0 0.0
    %311 = vmatpush1.msra.mxu0 0.0
    %312 = vmatprep.subr.mxu0 0.0
    %313 = vmatpush1.msra.mxu0 0.0
    %314 = vmatprep.subr.mxu0 0.0
    %315 = vmatpush1.msra.mxu0 0.0
    %316 = vmatprep.subr.mxu0 0.0
    %317 = vmatpush1.msra.mxu0 0.0
    %318 = vmatprep.subr.mxu0 0.0
    %319 = vmatpush1.msra.mxu0 0.0
    %320 = vmatprep.subr.mxu0 0.0
    %321 = vmatpush1.msra.mxu0 0.0
    %322 = vmatprep.subr.mxu0 0.0
    %v323 = vand.u32 %v66, 4294901760
    %v324 = vsub.f32 %v66, %v323
    %325 = vmatpush1.msra.mxu0 %v324
    %326 = vmatprep.subr.mxu0 0.0
    %v327 = vand.u32 %v49, 4294901760
    %v328 = vsub.f32 %v49, %v327
    %329 = vmatpush1.msra.mxu0 %v328
    %330 = vmatprep.subr.mxu0 0.0
    %v331 = vand.u32 %v48, 4294901760
    %v332 = vsub.f32 %v48, %v331
    %333 = vmatpush1.msra.mxu0 %v332
    %334 = vmatprep.subr.mxu0 0.0
    %v335 = vand.u32 %v47, 4294901760
    %v336 = vsub.f32 %v47, %v335
    %337 = vmatpush1.msra.mxu0 %v336
    %338 = vmatprep.subr.mxu0 0.0
    %v339 = vand.u32 %v46, 4294901760
    %v340 = vsub.f32 %v46, %v339
    %341 = vmatpush1.msra.mxu0 %v340
    %342 = vmatprep.subr.mxu0 0.0
    %v343 = vand.u32 %v45, 4294901760
    %v344 = vsub.f32 %v45, %v343
    %345 = vmatpush1.msra.mxu0 %v344
    %346 = vmatprep.subr.mxu0 0.0
    %v347 = vand.u32 %v44, 4294901760
    %v348 = vsub.f32 %v44, %v347
    %349 = vmatpush1.msra.mxu0 %v348
    %350 = vmatprep.subr.mxu0 0.0
    %351 = vmatpush2.msra.mxu0 0.0
    %352 = vmatprep.subr.mxu0 0.0
    %353 = vmatpush2.msra.mxu0 0.0
    %354 = vmatprep.subr.mxu0 0.0
    %355 = vmatpush2.msra.mxu0 0.0
    %356 = vmatprep.subr.mxu0 0.0
    %357 = vmatpush2.msra.mxu0 0.0
    %358 = vmatprep.subr.mxu0 0.0
    %359 = vmatpush2.msra.mxu0 0.0
    %360 = vmatprep.subr.mxu0 0.0
    %361 = vmatpush2.msra.mxu0 0.0
    %362 = vmatprep.subr.mxu0 0.0
    %363 = vmatpush2.msra.mxu0 0.0
    %364 = vmatprep.subr.mxu0 0.0
    %365 = vmatpush2.msra.mxu0 0.0
    %366 = vmatprep.subr.mxu0 0.0
    %367 = vmatpush2.msra.mxu0 0.0
    %368 = vmatprep.subr.mxu0 0.0
    %369 = vmatpush2.msra.mxu0 0.0
    %370 = vmatprep.subr.mxu0 0.0
    %371 = vmatpush2.msra.mxu0 0.0
    %372 = vmatprep.subr.mxu0 0.0
    %373 = vmatpush2.msra.mxu0 0.0
    %374 = vmatprep.subr.mxu0 0.0
    %375 = vmatpush2.msra.mxu0 0.0
    %376 = vmatprep.subr.mxu0 0.0
    %377 = vmatpush2.msra.mxu0 0.0
    %378 = vmatprep.subr.mxu0 0.0
    %379 = vmatpush2.msra.mxu0 0.0
    %380 = vmatprep.subr.mxu0 0.0
    %381 = vmatpush2.msra.mxu0 0.0
    %382 = vmatprep.mubr.f32.mxu0 0.0
    %v383 = vand.u32 %v53, 4294901760
    %v384 = vsub.f32 %v53, %v383
    %385 = vmatmul.mubr.f32.gmra.mxu0 %v384
    %v386 = vpop.f32.mrf.mxu0
    %v387 = vadd.f32 %v283, %v386
    %v388 = vpop.f32.mrf.mxu0
    %389 = vmatprep.mubr.f32.mxu0 0.0
    %v390 = vand.u32 %v56, 4294901760
    %v391 = vsub.f32 %v56, %v390
    %392 = vmatmul.mubr.f32.gmra.mxu0 %v391
    %v393 = vpop.f32.mrf.mxu0
    %v394 = vadd.f32 %v289, %v393
    %v395 = vpop.f32.mrf.mxu0
    %396 = vmatprep.mubr.f32.mxu0 0.0
    %v397 = vand.u32 %v59, 4294901760
    %v398 = vsub.f32 %v59, %v397
    %399 = vmatmul.mubr.f32.gmra.mxu0 %v398
    %v400 = vpop.f32.mrf.mxu0
    %v401 = vadd.f32 %v295, %v400
    %v402 = vpop.f32.mrf.mxu0
    %403 = vmatprep.mubr.f32.mxu0 0.0
    %v404 = vand.u32 %v62, 4294901760
    %v405 = vsub.f32 %v62, %v404
    %406 = vmatmul.mubr.f32.gmra.mxu0 %v405
    %v407 = vpop.f32.mrf.mxu0
    %v408 = vadd.f32 %v301, %v407
    %v409 = vpop.f32.mrf.mxu0
    %410 = vdwg.mxu0
    %411 = vmatprep.subr.mxu0 0.0
    %412 = vmatpush1.msra.mxu0 0.0
    %413 = vmatprep.subr.mxu0 0.0
    %414 = vmatpush1.msra.mxu0 0.0
    %415 = vmatprep.subr.mxu0 0.0
    %416 = vmatpush1.msra.mxu0 0.0
    %417 = vmatprep.subr.mxu0 0.0
    %418 = vmatpush1.msra.mxu0 0.0
    %419 = vmatprep.subr.mxu0 0.0
    %420 = vmatpush1.msra.mxu0 0.0
    %421 = vmatprep.subr.mxu0 0.0
    %422 = vmatpush1.msra.mxu0 0.0
    %423 = vmatprep.subr.mxu0 0.0
    %424 = vmatpush1.msra.mxu0 0.0
    %425 = vmatprep.subr.mxu0 0.0
    %426 = vmatpush1.msra.mxu0 0.0
    %427 = vmatprep.subr.mxu0 0.0
    %428 = vmatpush1.msra.mxu0 0.0
    %429 = vmatprep.subr.mxu0 0.0
    %v430 = vand.u32 %v66, 4294901760
    %431 = vmatpush1.msra.mxu0 %v430
    %432 = vmatprep.subr.mxu0 0.0
    %v433 = vand.u32 %v49, 4294901760
    %434 = vmatpush1.msra.mxu0 %v433
    %435 = vmatprep.subr.mxu0 0.0
    %v436 = vand.u32 %v48, 4294901760
    %437 = vmatpush1.msra.mxu0 %v436
    %438 = vmatprep.subr.mxu0 0.0
    %v439 = vand.u32 %v47, 4294901760
    %440 = vmatpush1.msra.mxu0 %v439
    %441 = vmatprep.subr.mxu0 0.0
    %v442 = vand.u32 %v46, 4294901760
    %443 = vmatpush1.msra.mxu0 %v442
    %444 = vmatprep.subr.mxu0 0.0
    %v445 = vand.u32 %v45, 4294901760
    %446 = vmatpush1.msra.mxu0 %v445
    %447 = vmatprep.subr.mxu0 0.0
    %v448 = vand.u32 %v44, 4294901760
    %449 = vmatpush1.msra.mxu0 %v448
    %450 = vmatprep.subr.mxu0 0.0
    %451 = vmatpush2.msra.mxu0 0.0
    %452 = vmatprep.subr.mxu0 0.0
    %453 = vmatpush2.msra.mxu0 0.0
    %454 = vmatprep.subr.mxu0 0.0
    %455 = vmatpush2.msra.mxu0 0.0
    %456 = vmatprep.subr.mxu0 0.0
    %457 = vmatpush2.msra.mxu0 0.0
    %458 = vmatprep.subr.mxu0 0.0
    %459 = vmatpush2.msra.mxu0 0.0
    %460 = vmatprep.subr.mxu0 0.0
    %461 = vmatpush2.msra.mxu0 0.0
    %462 = vmatprep.subr.mxu0 0.0
    %463 = vmatpush2.msra.mxu0 0.0
    %464 = vmatprep.subr.mxu0 0.0
    %465 = vmatpush2.msra.mxu0 0.0
    %466 = vmatprep.subr.mxu0 0.0
    %467 = vmatpush2.msra.mxu0 0.0
    %468 = vmatprep.subr.mxu0 0.0
    %469 = vmatpush2.msra.mxu0 0.0
    %470 = vmatprep.subr.mxu0 0.0
    %471 = vmatpush2.msra.mxu0 0.0
    %472 = vmatprep.subr.mxu0 0.0
    %473 = vmatpush2.msra.mxu0 0.0
    %474 = vmatprep.subr.mxu0 0.0
    %475 = vmatpush2.msra.mxu0 0.0
    %476 = vmatprep.subr.mxu0 0.0
    %477 = vmatpush2.msra.mxu0 0.0
    %478 = vmatprep.subr.mxu0 0.0
    %479 = vmatpush2.msra.mxu0 0.0
    %480 = vmatprep.subr.mxu0 0.0
    %481 = vmatpush2.msra.mxu0 0.0
    %482 = vmatprep.mubr.f32.mxu0 0.0
    %v483 = vand.u32 %v53, 4294901760
    %v484 = vsub.f32 %v53, %v483
    %v485 = vand.u32 %v484, 4294901760
    %486 = vmatmul.mubr.f32.gmra.mxu0 %v485
    %v487 = vpop.f32.mrf.mxu0
    %v488 = vadd.f32 %v387, %v487
    %v489 = vpop.f32.mrf.mxu0
    %490 = vmatprep.mubr.f32.mxu0 0.0
    %v491 = vand.u32 %v56, 4294901760
    %v492 = vsub.f32 %v56, %v491
    %v493 = vand.u32 %v492, 4294901760
    %494 = vmatmul.mubr.f32.gmra.mxu0 %v493
    %v495 = vpop.f32.mrf.mxu0
    %v496 = vadd.f32 %v394, %v495
    %v497 = vpop.f32.mrf.mxu0
    %498 = vmatprep.mubr.f32.mxu0 0.0
    %v499 = vand.u32 %v59, 4294901760
    %v500 = vsub.f32 %v59, %v499
    %v501 = vand.u32 %v500, 4294901760
    %502 = vmatmul.mubr.f32.gmra.mxu0 %v501
    %v503 = vpop.f32.mrf.mxu0
    %v504 = vadd.f32 %v401, %v503
    %v505 = vpop.f32.mrf.mxu0
    %506 = vmatprep.mubr.f32.mxu0 0.0
    %v507 = vand.u32 %v62, 4294901760
    %v508 = vsub.f32 %v62, %v507
    %v509 = vand.u32 %v508, 4294901760
    %510 = vmatmul.mubr.f32.gmra.mxu0 %v509
    %v511 = vpop.f32.mrf.mxu0
    %v512 = vadd.f32 %v408, %v511
    %v513 = vpop.f32.mrf.mxu0
    %514 = vdwg.mxu0
    %515 = vmatprep.subr.mxu0 0.0
    %516 = vmatpush1.msra.mxu0 0.0
    %517 = vmatprep.subr.mxu0 0.0
    %518 = vmatpush1.msra.mxu0 0.0
    %519 = vmatprep.subr.mxu0 0.0
    %520 = vmatpush1.msra.mxu0 0.0
    %521 = vmatprep.subr.mxu0 0.0
    %522 = vmatpush1.msra.mxu0 0.0
    %523 = vmatprep.subr.mxu0 0.0
    %524 = vmatpush1.msra.mxu0 0.0
    %525 = vmatprep.subr.mxu0 0.0
    %526 = vmatpush1.msra.mxu0 0.0
    %527 = vmatprep.subr.mxu0 0.0
    %528 = vmatpush1.msra.mxu0 0.0
    %529 = vmatprep.subr.mxu0 0.0
    %530 = vmatpush1.msra.mxu0 0.0
    %531 = vmatprep.subr.mxu0 0.0
    %532 = vmatpush1.msra.mxu0 0.0
    %533 = vmatprep.subr.mxu0 0.0
    %v534 = vand.u32 %v66, 4294901760
    %v535 = vsub.f32 %v66, %v534
    %v536 = vand.u32 %v535, 4294901760
    %537 = vmatpush1.msra.mxu0 %v536
    %538 = vmatprep.subr.mxu0 0.0
    %v539 = vand.u32 %v49, 4294901760
    %v540 = vsub.f32 %v49, %v539
    %v541 = vand.u32 %v540, 4294901760
    %542 = vmatpush1.msra.mxu0 %v541
    %543 = vmatprep.subr.mxu0 0.0
    %v544 = vand.u32 %v48, 4294901760
    %v545 = vsub.f32 %v48, %v544
    %v546 = vand.u32 %v545, 4294901760
    %547 = vmatpush1.msra.mxu0 %v546
    %548 = vmatprep.subr.mxu0 0.0
    %v549 = vand.u32 %v47, 4294901760
    %v550 = vsub.f32 %v47, %v549
    %v551 = vand.u32 %v550, 4294901760
    %552 = vmatpush1.msra.mxu0 %v551
    %553 = vmatprep.subr.mxu0 0.0
    %v554 = vand.u32 %v46, 4294901760
    %v555 = vsub.f32 %v46, %v554
    %v556 = vand.u32 %v555, 4294901760
    %557 = vmatpush1.msra.mxu0 %v556
    %558 = vmatprep.subr.mxu0 0.0
    %v559 = vand.u32 %v45, 4294901760
    %v560 = vsub.f32 %v45, %v559
    %v561 = vand.u32 %v560, 4294901760
    %562 = vmatpush1.msra.mxu0 %v561
    %563 = vmatprep.subr.mxu0 0.0
    %v564 = vand.u32 %v44, 4294901760
    %v565 = vsub.f32 %v44, %v564
    %v566 = vand.u32 %v565, 4294901760
    %567 = vmatpush1.msra.mxu0 %v566
    %568 = vmatprep.subr.mxu0 0.0
    %569 = vmatpush2.msra.mxu0 0.0
    %570 = vmatprep.subr.mxu0 0.0
    %571 = vmatpush2.msra.mxu0 0.0
    %572 = vmatprep.subr.mxu0 0.0
    %573 = vmatpush2.msra.mxu0 0.0
    %574 = vmatprep.subr.mxu0 0.0
    %575 = vmatpush2.msra.mxu0 0.0
    %576 = vmatprep.subr.mxu0 0.0
    %577 = vmatpush2.msra.mxu0 0.0
    %578 = vmatprep.subr.mxu0 0.0
    %579 = vmatpush2.msra.mxu0 0.0
    %580 = vmatprep.subr.mxu0 0.0
    %581 = vmatpush2.msra.mxu0 0.0
    %582 = vmatprep.subr.mxu0 0.0
    %583 = vmatpush2.msra.mxu0 0.0
    %584 = vmatprep.subr.mxu0 0.0
    %585 = vmatpush2.msra.mxu0 0.0
    %586 = vmatprep.subr.mxu0 0.0
    %587 = vmatpush2.msra.mxu0 0.0
    %588 = vmatprep.subr.mxu0 0.0
    %589 = vmatpush2.msra.mxu0 0.0
    %590 = vmatprep.subr.mxu0 0.0
    %591 = vmatpush2.msra.mxu0 0.0
    %592 = vmatprep.subr.mxu0 0.0
    %593 = vmatpush2.msra.mxu0 0.0
    %594 = vmatprep.subr.mxu0 0.0
    %595 = vmatpush2.msra.mxu0 0.0
    %596 = vmatprep.subr.mxu0 0.0
    %597 = vmatpush2.msra.mxu0 0.0
    %598 = vmatprep.subr.mxu0 0.0
    %599 = vmatpush2.msra.mxu0 0.0
    %600 = vmatprep.mubr.f32.mxu0 0.0
    %v601 = vand.u32 %v53, 4294901760
    %602 = vmatmul.mubr.f32.gmra.mxu0 %v601
    %v603 = vpop.f32.mrf.mxu0
    %v604 = vadd.f32 %v488, %v603
    %v605 = vpop.f32.mrf.mxu0
    %606 = vmatprep.mubr.f32.mxu0 0.0
    %v607 = vand.u32 %v56, 4294901760
    %608 = vmatmul.mubr.f32.gmra.mxu0 %v607
    %v609 = vpop.f32.mrf.mxu0
    %v610 = vadd.f32 %v496, %v609
    %v611 = vpop.f32.mrf.mxu0
    %612 = vmatprep.mubr.f32.mxu0 0.0
    %v613 = vand.u32 %v59, 4294901760
    %614 = vmatmul.mubr.f32.gmra.mxu0 %v613
    %v615 = vpop.f32.mrf.mxu0
    %v616 = vadd.f32 %v504, %v615
    %v617 = vpop.f32.mrf.mxu0
    %618 = vmatprep.mubr.f32.mxu0 0.0
    %v619 = vand.u32 %v62, 4294901760
    %620 = vmatmul.mubr.f32.gmra.mxu0 %v619
    %v621 = vpop.f32.mrf.mxu0
    %v622 = vadd.f32 %v512, %v621
    %v623 = vpop.f32.mrf.mxu0
    %624 = vdwg.mxu0
    %625 = vmatprep.subr.mxu0 0.0
    %626 = vmatpush1.msra.mxu0 0.0
    %627 = vmatprep.subr.mxu0 0.0
    %628 = vmatpush1.msra.mxu0 0.0
    %629 = vmatprep.subr.mxu0 0.0
    %630 = vmatpush1.msra.mxu0 0.0
    %631 = vmatprep.subr.mxu0 0.0
    %632 = vmatpush1.msra.mxu0 0.0
    %633 = vmatprep.subr.mxu0 0.0
    %634 = vmatpush1.msra.mxu0 0.0
    %635 = vmatprep.subr.mxu0 0.0
    %636 = vmatpush1.msra.mxu0 0.0
    %637 = vmatprep.subr.mxu0 0.0
    %638 = vmatpush1.msra.mxu0 0.0
    %639 = vmatprep.subr.mxu0 0.0
    %640 = vmatpush1.msra.mxu0 0.0
    %641 = vmatprep.subr.mxu0 0.0
    %642 = vmatpush1.msra.mxu0 0.0
    %643 = vmatprep.subr.mxu0 0.0
    %v644 = vand.u32 %v66, 4294901760
    %645 = vmatpush1.msra.mxu0 %v644
    %646 = vmatprep.subr.mxu0 0.0
    %v647 = vand.u32 %v49, 4294901760
    %648 = vmatpush1.msra.mxu0 %v647
    %649 = vmatprep.subr.mxu0 0.0
    %v650 = vand.u32 %v48, 4294901760
    %651 = vmatpush1.msra.mxu0 %v650
    %652 = vmatprep.subr.mxu0 0.0
    %v653 = vand.u32 %v47, 4294901760
    %654 = vmatpush1.msra.mxu0 %v653
    %655 = vmatprep.subr.mxu0 0.0
    %v656 = vand.u32 %v46, 4294901760
    %657 = vmatpush1.msra.mxu0 %v656
    %658 = vmatprep.subr.mxu0 0.0
    %v659 = vand.u32 %v45, 4294901760
    %660 = vmatpush1.msra.mxu0 %v659
    %661 = vmatprep.subr.mxu0 0.0
    %v662 = vand.u32 %v44, 4294901760
    %663 = vmatpush1.msra.mxu0 %v662
    %664 = vmatprep.subr.mxu0 0.0
    %665 = vmatpush2.msra.mxu0 0.0
    %666 = vmatprep.subr.mxu0 0.0
    %667 = vmatpush2.msra.mxu0 0.0
    %668 = vmatprep.subr.mxu0 0.0
    %669 = vmatpush2.msra.mxu0 0.0
    %670 = vmatprep.subr.mxu0 0.0
    %671 = vmatpush2.msra.mxu0 0.0
    %672 = vmatprep.subr.mxu0 0.0
    %673 = vmatpush2.msra.mxu0 0.0
    %674 = vmatprep.subr.mxu0 0.0
    %675 = vmatpush2.msra.mxu0 0.0
    %676 = vmatprep.subr.mxu0 0.0
    %677 = vmatpush2.msra.mxu0 0.0
    %678 = vmatprep.subr.mxu0 0.0
    %679 = vmatpush2.msra.mxu0 0.0
    %680 = vmatprep.subr.mxu0 0.0
    %681 = vmatpush2.msra.mxu0 0.0
    %682 = vmatprep.subr.mxu0 0.0
    %683 = vmatpush2.msra.mxu0 0.0
    %684 = vmatprep.subr.mxu0 0.0
    %685 = vmatpush2.msra.mxu0 0.0
    %686 = vmatprep.subr.mxu0 0.0
    %687 = vmatpush2.msra.mxu0 0.0
    %688 = vmatprep.subr.mxu0 0.0
    %689 = vmatpush2.msra.mxu0 0.0
    %690 = vmatprep.subr.mxu0 0.0
    %691 = vmatpush2.msra.mxu0 0.0
    %692 = vmatprep.subr.mxu0 0.0
    %693 = vmatpush2.msra.mxu0 0.0
    %694 = vmatprep.subr.mxu0 0.0
    %695 = vmatpush2.msra.mxu0 0.0
    %696 = vmatprep.mubr.f32.mxu0 0.0
    %v697 = vand.u32 %v53, 4294901760
    %698 = vmatmul.mubr.f32.gmra.mxu0 %v697
    %v699 = vpop.f32.mrf.mxu0
    %v700 = vadd.f32 %v604, %v699
    %v701 = vpop.f32.mrf.mxu0
    %702 = vmatprep.mubr.f32.mxu0 0.0
    %v703 = vand.u32 %v56, 4294901760
    %704 = vmatmul.mubr.f32.gmra.mxu0 %v703
    %v705 = vpop.f32.mrf.mxu0
    %v706 = vadd.f32 %v610, %v705
    %v707 = vpop.f32.mrf.mxu0
    %708 = vmatprep.mubr.f32.mxu0 0.0
    %v709 = vand.u32 %v59, 4294901760
    %710 = vmatmul.mubr.f32.gmra.mxu0 %v709
    %v711 = vpop.f32.mrf.mxu0
    %v712 = vadd.f32 %v616, %v711
    %v713 = vpop.f32.mrf.mxu0
    %714 = vmatprep.mubr.f32.mxu0 0.0
    %v715 = vand.u32 %v62, 4294901760
    %716 = vmatmul.mubr.f32.gmra.mxu0 %v715
    %v717 = vpop.f32.mrf.mxu0
    %v718 = vadd.f32 %v622, %v717
    %v719 = vpop.f32.mrf.mxu0
    %720 = vdwg.mxu0
    %v721 = vtanh.pop %v700
    %v722 = vtanh.pop %v706
    %v723 = vtanh.pop %v712
    %v724 = vtanh.pop %v718
    %725 = vst [vmem:[#allocation7] sm:$0xff] %v721
    %726 = vst [vmem:[#allocation7 + $0x8] sm:$0xff] %v722
    %727 = vst [vmem:[#allocation7 + $0x10] sm:$0xff] %v723
    %728 = vst [vmem:[#allocation7 + $0x18] sm:$0xff] %v724
    // Predicated region
    $region18: #{mlp_layer2.1} parent=1 // pred_check
      _
    $region19: #{mlp_layer2.1} parent=1 // pred_check_branch
      %730 = sbr.rel (0) target = $region21
    $region20: #{mlp_layer2.1} parent=1 // pred_region
      %s732 = ssub.s32 512, 512
      %733 = vsyncadd [#allocation4], %s732
      %s734 = sshll.u32 [#allocation7], 4
      %s735 = int_to_ptr.vmem [resolvable:$true] %s734
      %740 = dma.vmem_to_hbm [thread:$0]  %s735, 512, %s2, [#allocation4], 128, 128, 8
    $region21: #{mlp_layer2.1} parent=1 // pred_fallthru
      _
    // Predicated region
    $region22: #{mlp_layer2.1} parent=1 // pred_check
      _
    $region23: #{mlp_layer2.1} parent=1 // pred_check_branch
      %742 = sbr.rel (0) target = $region25
    $region24: #{mlp_layer2.1} parent=1 // pred_region
      %743 = dma.done [#allocation4], 512
    $region25: #{mlp_layer2.1} parent=1 // pred_fallthru
      _
    %744 = vsyncpa [#allocation3], 1
    %745 = vsyncpa [#allocation6], 1
    %746 = vsyncpa [#allocation4], 1

</llo_original>
